<compile_context>
chip_gen: v6e
topology: v6e:2x2x1
jax: 0.10.0
libtpu: 0.0.40
codegen_flags: <defaults>
</compile_context>

<pallas_src>
import functools

import jax
import jax.numpy as jnp
from jax import lax
from jax.experimental import pallas as pl
from jax.experimental.pallas import tpu as pltpu


def _matrix_kernel(m_ref, x_ref, o_ref, *, adjoint: bool):
    """Single-invocation matmul kernel; contraction axis picked via dot_general."""
    m = m_ref[...]
    x = x_ref[...]
    if adjoint:
        # matrix.T @ x  == contract matrix axis 0 with x axis 0 (no transpose op).
        dnums = (((0,), (0,)), ((), ()))
    else:
        # matrix @ x    == contract matrix axis 1 with x axis 0.
        dnums = (((1,), (0,)), ((), ()))
    out = lax.dot_general(m, x, dimension_numbers=dnums,
                          preferred_element_type=jnp.float32)
    o_ref[...] = out.astype(o_ref.dtype)


def matrix_forward(matrix: jax.Array, inputs: jax.Array, adjoint: bool = True) -> jax.Array:
    """Pallas equivalent of Matrix.forward.

    matrix: [num_rows, num_cols]
    inputs: [num_rows, rank] if adjoint else [num_cols, rank]
    returns: [num_cols, rank] if adjoint else [num_rows, rank]
    """
    num_rows, num_cols = matrix.shape
    k_dim, rank = inputs.shape
    if adjoint:
        assert k_dim == num_rows, f"expected inputs first dim {num_rows}, got {k_dim}"
        out_dim = num_cols
    else:
        assert k_dim == num_cols, f"expected inputs first dim {num_cols}, got {k_dim}"
        out_dim = num_rows

    # Single compute dtype for both MXU operands; f32 accumulation in-kernel.
    compute_dtype = jnp.result_type(matrix.dtype, inputs.dtype)
    matrix = matrix.astype(compute_dtype)
    inputs = inputs.astype(compute_dtype)

    # Gridless path: everything must be VMEM-resident. These shapes are tiny;
    # keep a conservative guard so misuse at huge shapes fails loudly.
    elem_bytes = jnp.dtype(compute_dtype).itemsize
    total_bytes = elem_bytes * (matrix.size + inputs.size + out_dim * rank)
    assert total_bytes < 8 * 1024 * 1024, (
        "matrix_forward gridless path expects operands to fit comfortably in "
        f"VMEM; got ~{total_bytes} bytes. "
        # TODO(synk): add a tiled (grid over out_dim/rank, reduction over k) path
        # for matrices that do not fit in VMEM.
    )

    kernel = functools.partial(_matrix_kernel, adjoint=adjoint)
    vmem_spec = pl.BlockSpec(memory_space=pltpu.MemorySpace.VMEM)

    cost = pl.CostEstimate(
        flops=2 * out_dim * rank * k_dim,
        transcendentals=0,
        bytes_accessed=int(total_bytes),
    )

    return pl.pallas_call(
        kernel,
        out_shape=jax.ShapeDtypeStruct((out_dim, rank), compute_dtype),
        in_specs=[vmem_spec, vmem_spec],   # whole arrays resident in VMEM, no grid
        out_specs=vmem_spec,
        cost_estimate=cost,
    )(matrix, inputs)


if __name__ == "__main__":
    # Module shape choice: num_cols=16, num_rows=32.
    # rank=128 keeps shapes small (~16 KB) while making the last (lane) dim
    # dense, so the output store is an unmasked vst.
    num_cols, num_rows, rank = 16, 32, 128

    key = jax.random.PRNGKey(0)
    k_m, k_xa, k_xn = jax.random.split(key, 3)

    # nn.Parameter(torch.zeros(num_rows, num_cols)) — zero-init makes the output
    # trivially zero, so initialize deterministically with random values for a
    # meaningful numerical check (synthetic weights, no checkpoint).
    matrix = jax.random.normal(k_m, (num_rows, num_cols), dtype=jnp.float32)

    # adjoint=True path (default): inputs [num_rows, rank] -> outputs [num_cols, rank]
    x_adj = jax.random.normal(k_xa, (num_rows, rank), dtype=jnp.float32)
    out_adj = jax.block_until_ready(matrix_forward(matrix, x_adj, adjoint=True))
    ref_adj = matrix.T @ x_adj
    assert out_adj.shape == (num_cols, rank)
    assert jnp.allclose(out_adj, ref_adj, atol=1e-5, rtol=1e-5)

    # adjoint=False path: inputs [num_cols, rank] -> outputs [num_rows, rank]
    x_non = jax.random.normal(k_xn, (num_cols, rank), dtype=jnp.float32)
    out_non = jax.block_until_ready(matrix_forward(matrix, x_non, adjoint=False))
    ref_non = matrix @ x_non
    assert out_non.shape == (num_rows, rank)
    assert jnp.allclose(out_non, ref_non, atol=1e-5, rtol=1e-5)

    print("KERNEL_OK")
</pallas_src>

<mosaic_0001>
module attributes {stable_mosaic.version = 11 : i64} {
  func.func @_matrix_kernel(%arg0: memref<32x16xf32, #tpu.memory_space<vmem>>, %arg1: memref<32x128xf32, #tpu.memory_space<vmem>>, %arg2: memref<16x128xf32, #tpu.memory_space<vmem>>) attributes {dimension_semantics = [], scalar_prefetch = 0 : i64, scratch_operands = 0 : i64, tpu.core_type = #tpu.core_type<tc>} {
    %c0 = arith.constant 0 : index
    %c0_0 = arith.constant 0 : index
    %0 = vector.load %arg0[%c0, %c0_0] : memref<32x16xf32, #tpu.memory_space<vmem>>, vector<32x16xf32>
    %c0_1 = arith.constant 0 : index
    %c0_2 = arith.constant 0 : index
    %1 = vector.load %arg1[%c0_1, %c0_2] : memref<32x128xf32, #tpu.memory_space<vmem>>, vector<32x128xf32>
    %cst = arith.constant dense<0.000000e+00> : vector<16x128xf32>
    %2 = tpu.matmul %0, %1, %cst {dimension_numbers = #tpu.dot_dimension_numbers<[0], [0], [1], [1], [0, 1, 1, 1], [], []>} : vector<32x16xf32>, vector<32x128xf32>, vector<16x128xf32> -> vector<16x128xf32>
    %c0_3 = arith.constant 0 : index
    %c0_4 = arith.constant 0 : index
    %3 = vector.load %arg2[%c0_3, %c0_4] : memref<16x128xf32, #tpu.memory_space<vmem>>, vector<16x128xf32>
    tpu.vector_store %arg2[%c0_3, %c0_4], %2 {strides = array<i32>} : memref<16x128xf32, #tpu.memory_space<vmem>>, vector<16x128xf32>,
    return
  }
}

</mosaic_0001>

<llo_original>
// kernel: tpu_custom_call.1
$region0: #{tpu_custom_call.1}
  #allocation0 [shape = 'u32[]', space=smem, size = 0x4, offset = 0x4, fixed_abs, tag = 'smem constant byte address 0x4 - core index']
  #allocation1 [shape = 'u32[144,128]{1,0:T(1,128)}', space=vmem, size = 0x12000, scoped, tag = 'internal scratch']
  %s0 = inlined_call_operand.vmem [shape: f32[32,16], index: 0, kind: input, shape index: {}]
  %s1 = inlined_call_operand.vmem [shape: f32[32,128], index: 1, kind: input, shape index: {}]
  %s2 = inlined_call_operand.hbm [shape: f32[16,128], index: 2, kind: output, shape index: {}]
  %s3 = sld [smem:[#allocation0]]
  $region18: #{tpu_custom_call.1} parent=0
    _
  %s5 = ssub.s32 1, %s3
  %s6 = scalar_select 0, %s5, %s3
  $region1: #{tpu_custom_call.1} parent=0
    #allocation2 [shape = 'u8[8192]{0}', space=vmem, size = 0x2000, scoped, tag = 'output window, operand 0, single buffered']
    #allocation3 [shape = 's32[1]{0}', space=sflag, size = 0x4, scoped, tag = 'scoped memory for tpu_custom_call.1']
    %7 = vsyncpa [#allocation3], 0
    // Predicated region
    $region2: #{tpu_custom_call.1} parent=1 // pred_check
      _
    $region3: #{tpu_custom_call.1} parent=1 // pred_check_branch
      %9 = sbr.rel (0) target = $region5
    $region4: #{tpu_custom_call.1} parent=1 // pred_region
      _
    $region5: #{tpu_custom_call.1} parent=1 // pred_fallthru
      _
    // Predicated region
    $region6: #{tpu_custom_call.1} parent=1 // pred_check
      _
    $region7: #{tpu_custom_call.1} parent=1 // pred_check_branch
      %11 = sbr.rel (0) target = $region9
    $region8: #{tpu_custom_call.1} parent=1 // pred_region
      _
    $region9: #{tpu_custom_call.1} parent=1 // pred_fallthru
      _
    %v12 = vld [vmem:[%s0] sm:$0xff]
    %v13 = vld [vmem:[%s0 + $0x8] sm:$0xff]
    %v14 = vld [vmem:[%s0 + $0x10] sm:$0xff]
    %v15 = vld [vmem:[%s0 + $0x18] sm:$0xff]
    %v16 = vld [vmem:[%s1] sm:$0xff]
    %v17 = vld [vmem:[%s1 + $0x8] sm:$0xff]
    %v18 = vld [vmem:[%s1 + $0x10] sm:$0xff]
    %v19 = vld [vmem:[%s1 + $0x18] sm:$0xff]
    %20 = vxpose.xlu0.b32.start [1/16] %v12, 128
    %21 = vxpose.xlu0.b32.cont [2/16] %v13, 128
    %22 = vxpose.xlu0.b32.cont [3/16] %v14, 128
    %23 = vxpose.xlu0.b32.cont [4/16] %v15, 128
    %24 = vxpose.xlu0.b32.cont [5/16] 0.0, 128
    %25 = vxpose.xlu0.b32.cont [6/16] 0.0, 128
    %26 = vxpose.xlu0.b32.cont [7/16] 0.0, 128
    %27 = vxpose.xlu0.b32.cont [8/16] 0.0, 128
    %28 = vxpose.xlu0.b32.cont [9/16] 0.0, 128
    %29 = vxpose.xlu0.b32.cont [10/16] 0.0, 128
    %30 = vxpose.xlu0.b32.cont [11/16] 0.0, 128
    %31 = vxpose.xlu0.b32.cont [12/16] 0.0, 128
    %32 = vxpose.xlu0.b32.cont [13/16] 0.0, 128
    %33 = vxpose.xlu0.b32.cont [14/16] 0.0, 128
    %34 = vxpose.xlu0.b32.cont [15/16] 0.0, 128
    %35 = vxpose.xlu0.b32.end [16/16] 0.0, 128
    %v36 = vpop.trf.xlu0
    %v37 = vpop.trf.xlu0
    %v38 = vpop.trf.xlu0
    %v39 = vpop.trf.xlu0
    %v40 = vpop.trf.xlu0
    %v41 = vpop.trf.xlu0
    %v42 = vpop.trf.xlu0
    %v43 = vpop.trf.xlu0
    %v44 = vpop.trf.xlu0
    %v45 = vpop.trf.xlu0
    %v46 = vpop.trf.xlu0
    %v47 = vpop.trf.xlu0
    %v48 = vpop.trf.xlu0
    %v49 = vpop.trf.xlu0
    %v50 = vpop.trf.xlu0
    %v51 = vpop.trf.xlu0
    %vm52 = vcmask 261120
    %v54 = vsel %vm52, %v36, 0
    %v57 = vsel %vm52, %v37, 0
    %59 = vmatprep.subr.mxu0 0.0
    %60 = vmatpush1.msra.mxu0 0.0
    %61 = vmatprep.subr.mxu0 0.0
    %62 = vmatpush1.msra.mxu0 0.0
    %63 = vmatprep.subr.mxu0 0.0
    %64 = vmatpush1.msra.mxu0 0.0
    %65 = vmatprep.subr.mxu0 0.0
    %66 = vmatpush1.msra.mxu0 0.0
    %67 = vmatprep.subr.mxu0 0.0
    %68 = vmatpush1.msra.mxu0 0.0
    %69 = vmatprep.subr.mxu0 0.0
    %70 = vmatpush1.msra.mxu0 0.0
    %71 = vmatprep.subr.mxu0 0.0
    %72 = vmatpush1.msra.mxu0 0.0
    %73 = vmatprep.subr.mxu0 0.0
    %74 = vmatpush1.msra.mxu0 0.0
    %75 = vmatprep.subr.mxu0 0.0
    %76 = vmatpush1.msra.mxu0 0.0
    %77 = vmatprep.subr.mxu0 0.0
    %78 = vmatpush1.msra.mxu0 0.0
    %79 = vmatprep.subr.mxu0 0.0
    %80 = vmatpush1.msra.mxu0 0.0
    %81 = vmatprep.subr.mxu0 0.0
    %82 = vmatpush1.msra.mxu0 0.0
    %83 = vmatprep.subr.mxu0 0.0
    %84 = vmatpush1.msra.mxu0 %v19
    %85 = vmatprep.subr.mxu0 0.0
    %86 = vmatpush1.msra.mxu0 %v18
    %87 = vmatprep.subr.mxu0 0.0
    %88 = vmatpush1.msra.mxu0 %v17
    %89 = vmatprep.subr.mxu0 0.0
    %90 = vmatpush1.msra.mxu0 %v16
    %91 = vmatprep.subr.mxu0 0.0
    %92 = vmatpush2.msra.mxu0 0.0
    %93 = vmatprep.subr.mxu0 0.0
    %94 = vmatpush2.msra.mxu0 0.0
    %95 = vmatprep.subr.mxu0 0.0
    %96 = vmatpush2.msra.mxu0 0.0
    %97 = vmatprep.subr.mxu0 0.0
    %98 = vmatpush2.msra.mxu0 0.0
    %99 = vmatprep.subr.mxu0 0.0
    %100 = vmatpush2.msra.mxu0 0.0
    %101 = vmatprep.subr.mxu0 0.0
    %102 = vmatpush2.msra.mxu0 0.0
    %103 = vmatprep.subr.mxu0 0.0
    %104 = vmatpush2.msra.mxu0 0.0
    %105 = vmatprep.subr.mxu0 0.0
    %106 = vmatpush2.msra.mxu0 0.0
    %107 = vmatprep.subr.mxu0 0.0
    %108 = vmatpush2.msra.mxu0 0.0
    %109 = vmatprep.subr.mxu0 0.0
    %110 = vmatpush2.msra.mxu0 0.0
    %111 = vmatprep.subr.mxu0 0.0
    %112 = vmatpush2.msra.mxu0 0.0
    %113 = vmatprep.subr.mxu0 0.0
    %114 = vmatpush2.msra.mxu0 0.0
    %115 = vmatprep.subr.mxu0 0.0
    %116 = vmatpush2.msra.mxu0 0.0
    %117 = vmatprep.subr.mxu0 0.0
    %118 = vmatpush2.msra.mxu0 0.0
    %119 = vmatprep.subr.mxu0 0.0
    %120 = vmatpush2.msra.mxu0 0.0
    %121 = vmatprep.subr.mxu0 0.0
    %122 = vmatpush2.msra.mxu0 0.0
    %123 = vmatprep.mubr.f32.mxu0 0.0
    %124 = vmatmul.mubr.f32.gmra.mxu0 %v54
    %v125 = vpop.f32.mrf.mxu0
    %v126 = vadd.f32 0.0, %v125
    %v127 = vpop.f32.mrf.mxu0
    %128 = vmatprep.mubr.f32.mxu0 0.0
    %129 = vmatmul.mubr.f32.gmra.mxu0 %v57
    %v130 = vpop.f32.mrf.mxu0
    %v131 = vadd.f32 0.0, %v130
    %v132 = vpop.f32.mrf.mxu0
    %133 = vdwg.mxu0
    %134 = vst [vmem:[#allocation2] sm:$0xff] %v126
    %135 = vst [vmem:[#allocation2 + $0x8] sm:$0xff] %v131
    // Predicated region
    $region10: #{tpu_custom_call.1} parent=1 // pred_check
      _
    $region11: #{tpu_custom_call.1} parent=1 // pred_check_branch
      %137 = sbr.rel (0) target = $region13
    $region12: #{tpu_custom_call.1} parent=1 // pred_region
      %s139 = ssub.s32 256, 256
      %140 = vsyncadd [#allocation3], %s139
      %s141 = sshll.u32 [#allocation2], 4
      %s142 = int_to_ptr.vmem [resolvable:$true] %s141
      %147 = dma.vmem_to_hbm [thread:$0]  %s142, 256, %s2, [#allocation3], 128, 128, 8
    $region13: #{tpu_custom_call.1} parent=1 // pred_fallthru
      _
    // Predicated region
    $region14: #{tpu_custom_call.1} parent=1 // pred_check
      _
    $region15: #{tpu_custom_call.1} parent=1 // pred_check_branch
      %149 = sbr.rel (0) target = $region17
    $region16: #{tpu_custom_call.1} parent=1 // pred_region
      %150 = dma.done [#allocation3], 256
    $region17: #{tpu_custom_call.1} parent=1 // pred_fallthru
      _
    %151 = vsyncpa [#allocation3], 1

</llo_original>
